<compile_context>
chip_gen: v6e
topology: v6e:2x2x1
jax: 0.10.0
libtpu: 0.0.40
codegen_flags: <defaults>
</compile_context>

<pallas_src>
from functools import partial

import numpy as np
import jax
import jax.numpy as jnp
from jax.experimental import pallas as pl
from jax.experimental.pallas import tpu as pltpu

mu_init = 0.5        # Parameter(torch.tensor(0.5))
omega = 40
pi = np.pi

_LANES = 128
_SUBLANES = 8
_MAX_TILE_ROWS = 2048   # 2048 * 128 * 4 B = 1 MiB per operand per pipeline buffer


def _expr_kernel(mu_ref, du_dt_ref, t_ref, f_ref):
    # mu_ref: (1,) scalar parameter in SMEM
    # du_dt_ref, t_ref, f_ref: (tile_rows, 128) lane-dense f32 tiles in VMEM
    w = jnp.float32(omega * pi)
    mu = mu_ref[0]
    t = t_ref[...]
    d = t - mu                  # hoisted CSE
    wt = w * t                  # hoisted CSE, shared by sin and cos
    # f = du - 2*d*cos(wt) + w*d^2*sin(wt)  ==  du + d*(w*d*sin(wt) - 2*cos(wt))
    f_ref[...] = du_dt_ref[...] + d * (w * d * jnp.sin(wt) - 2.0 * jnp.cos(wt))


def _pick_tile_rows(rows: int) -> int:
    """Rows per tile: <= _MAX_TILE_ROWS, multiple of 8 (or == rows), >= 2 grid
    steps when possible (v7x megacore), preferring an exact divisor of `rows`
    so no edge block is partial."""
    if rows <= _SUBLANES:
        return rows                                    # single full-array block
    half = (rows + 1) // 2
    target = min(_MAX_TILE_ROWS, pl.cdiv(half, _SUBLANES) * _SUBLANES)
    for tr in range(target, max(target // 2, 0), -_SUBLANES):
        if rows % tr == 0:
            return tr                                   # uniform, unmasked blocks
    return target                                       # partial edge block (masked)


@partial(jax.jit, static_argnums=0)
def _forward(u_fn, t, mu):
    """Fused jvp(u_fn) + Pallas residual, all under one jit."""
    orig_shape = t.shape
    n = t.size

    # Lane-dense layout: flatten and view as (rows, 128) so every vreg row is
    # full and stores are unmasked. Pad only when N is not a multiple of 128.
    t_flat = t.reshape(-1).astype(jnp.float32)
    n_pad = pl.cdiv(n, _LANES) * _LANES
    if n_pad != n:
        t_flat = jnp.pad(t_flat, (0, n_pad - n))
    rows = n_pad // _LANES
    t2 = t_flat.reshape(rows, _LANES)

    # du/dt via forward-mode AD, evaluated directly on the lane-dense t2
    # (valid because u_fn is pointwise in t) -> du_dt is born (rows, 128),
    # no relayout or extra HBM pass before the kernel.
    _, du2 = jax.jvp(u_fn, (t2,), (jnp.ones_like(t2),))
    du2 = du2.astype(jnp.float32)

    tile_rows = _pick_tile_rows(rows)
    grid = (pl.cdiv(rows, tile_rows),)
    mu_arr = jnp.asarray(mu, jnp.float32).reshape((1,))

    f2 = pl.pallas_call(
        _expr_kernel,
        out_shape=jax.ShapeDtypeStruct((rows, _LANES), jnp.float32),
        grid=grid,
        in_specs=[
            pl.BlockSpec(memory_space=pltpu.SMEM),                 # mu (scalar param)
            pl.BlockSpec((tile_rows, _LANES), lambda i: (i, 0)),   # du_dt
            pl.BlockSpec((tile_rows, _LANES), lambda i: (i, 0)),   # t
        ],
        out_specs=pl.BlockSpec((tile_rows, _LANES), lambda i: (i, 0)),
        input_output_aliases={1: 0},                               # reuse du_dt buffer for f
        compiler_params=pltpu.CompilerParams(
            dimension_semantics=("parallel",)),
        cost_estimate=pl.CostEstimate(
            flops=8 * n_pad,
            transcendentals=2 * n_pad,
            bytes_accessed=12 * n_pad),
    )(mu_arr, du2, t2)

    # Restore the original (N, 1) PINN layout; slicing only happens on the
    # ragged-N fallback path (N % 128 != 0).
    f_flat = f2.reshape(-1)
    if n_pad != n:
        f_flat = f_flat[:n]
    return f_flat.reshape(orig_shape)


def my_expression(u_fn, t, mu=mu_init):
    """Pallas equivalent of MyExpression.forward(u, t) with u = u_fn(t)."""
    # TODO(synk): torch.autograd-style diff(u, t) on bare arrays has no Pallas
    # equivalent; the derivative is taken of the generating function u_fn via
    # forward-mode AD instead (valid because u_fn is pointwise in t).
    return _forward(u_fn, t, mu)


def _reference(u_fn, t, mu):
    """Pure-JAX reference mirroring the PyTorch forward semantics."""
    _, du_dt = jax.jvp(u_fn, (t,), (jnp.ones_like(t),))
    w = omega * pi
    k1 = 2.0 * (t - mu) * jnp.cos(w * t)
    return du_dt - k1 + w * (t - mu) ** 2 * jnp.sin(w * t)


if __name__ == "__main__":
    key = jax.random.PRNGKey(0)

    # Manufactured "solution" u(t) (stands in for the PINN network output)
    def u_fn(tt):
        return (tt - mu_init) ** 2 * jnp.sin(omega * jnp.pi * tt)

    # Exercise the zero-copy path (N % 128 == 0), the ragged fallback (N=300),
    # and the multi-block / two-TensorCore path (N=4096 -> grid of 2).
    for n in (256, 300, 4096):
        t = jax.random.uniform(jax.random.fold_in(key, n), (n, 1),
                               dtype=jnp.float32)
        u = u_fn(t)  # matches the module's `u` argument (only used via diff(u, t))

        f = jax.block_until_ready(my_expression(u_fn, t, mu_init))
        f_ref = _reference(u_fn, t, jnp.float32(mu_init))

        np.testing.assert_allclose(np.asarray(f), np.asarray(f_ref),
                                   rtol=1e-5, atol=1e-4)
        assert f.shape == (n, 1) and f.dtype == jnp.float32

    print("KERNEL_OK")
</pallas_src>

<mosaic_0001>
module attributes {stable_mosaic.version = 11 : i64} {
  func.func @_expr_kernel(%arg0: i32, %arg1: memref<1xf32, #tpu.memory_space<smem>>, %arg2: memref<2x128xf32, #tpu.memory_space<vmem>>, %arg3: memref<2x128xf32, #tpu.memory_space<vmem>>, %arg4: memref<2x128xf32, #tpu.memory_space<vmem>>) attributes {dimension_semantics = [#tpu.dimension_semantics<parallel>], iteration_bounds = array<i64: 1>, scalar_prefetch = 0 : i64, scratch_operands = 0 : i64, tpu.core_type = #tpu.core_type<tc>, window_params = [{transform_indices = @transform_0, window_bounds = array<i64: 1>}, {transform_indices = @transform_1, window_bounds = array<i64: 2, 128>}, {transform_indices = @transform_2, window_bounds = array<i64: 2, 128>}, {transform_indices = @transform_3, window_bounds = array<i64: 2, 128>}]} {
    %c0 = arith.constant 0 : index
    %0 = memref.load %arg1[%c0] : memref<1xf32, #tpu.memory_space<smem>>
    %c0_0 = arith.constant 0 : index
    %c0_1 = arith.constant 0 : index
    %1 = vector.load %arg3[%c0_0, %c0_1] : memref<2x128xf32, #tpu.memory_space<vmem>>, vector<2x128xf32>
    %2 = vector.broadcast %0 : f32 to vector<2x128xf32>
    %3 = arith.subf %1, %2 : vector<2x128xf32>
    %cst = arith.constant 125.663704 : f32
    %4 = vector.broadcast %cst : f32 to vector<2x128xf32>
    %5 = arith.mulf %4, %1 : vector<2x128xf32>
    %c0_2 = arith.constant 0 : index
    %c0_3 = arith.constant 0 : index
    %6 = vector.load %arg2[%c0_2, %c0_3] : memref<2x128xf32, #tpu.memory_space<vmem>>, vector<2x128xf32>
    %cst_4 = arith.constant 125.663704 : f32
    %7 = vector.broadcast %cst_4 : f32 to vector<2x128xf32>
    %8 = arith.mulf %7, %3 : vector<2x128xf32>
    %9 = math.sin %5 : vector<2x128xf32>
    %10 = arith.mulf %8, %9 : vector<2x128xf32>
    %11 = math.cos %5 : vector<2x128xf32>
    %cst_5 = arith.constant 2.000000e+00 : f32
    %12 = vector.broadcast %cst_5 : f32 to vector<2x128xf32>
    %13 = arith.mulf %12, %11 : vector<2x128xf32>
    %14 = arith.subf %10, %13 : vector<2x128xf32>
    %15 = arith.mulf %3, %14 : vector<2x128xf32>
    %16 = arith.addf %6, %15 : vector<2x128xf32>
    %c0_6 = arith.constant 0 : index
    %c0_7 = arith.constant 0 : index
    %17 = vector.load %arg4[%c0_6, %c0_7] : memref<2x128xf32, #tpu.memory_space<vmem>>, vector<2x128xf32>
    tpu.vector_store %arg4[%c0_6, %c0_7], %16 {strides = array<i32>} : memref<2x128xf32, #tpu.memory_space<vmem>>, vector<2x128xf32>,
    return
  }
  func.func @transform_0(%arg0: i32) -> i32 {
    %c0_i32 = arith.constant 0 : i32
    %c0_i32_0 = arith.constant 0 : i32
    return %c0_i32 : i32
  }
  func.func @transform_1(%arg0: i32) -> (i32, i32) {
    %c0_i32 = arith.constant 0 : i32
    %c0_i32_0 = arith.constant 0 : i32
    return %arg0, %c0_i32 : i32, i32
  }
  func.func @transform_2(%arg0: i32) -> (i32, i32) {
    %c0_i32 = arith.constant 0 : i32
    %c0_i32_0 = arith.constant 0 : i32
    return %arg0, %c0_i32 : i32, i32
  }
  func.func @transform_3(%arg0: i32) -> (i32, i32) {
    %c0_i32 = arith.constant 0 : i32
    %c0_i32_0 = arith.constant 0 : i32
    return %arg0, %c0_i32 : i32, i32
  }
}

</mosaic_0001>

<llo_original>
// kernel: _forward.1
$region0: #{_forward.1}
  #allocation0 [shape = 'u32[]', space=smem, size = 0x4, offset = 0x4, fixed_abs, tag = 'smem constant byte address 0x4 - core index']
  #allocation1 [shape = 'u32[144,128]{1,0:T(1,128)}', space=vmem, size = 0x12000, scoped, tag = 'internal scratch']
  #allocation2 [shape = 'f32[1]{0:T(128)S(6)}', space=smem, size = 0x200, scoped, tag = 'scoped memory for _forward.1']
  %s0 = inlined_call_operand.<no memory space> [shape: f32[1], index: 0, kind: input, shape index: {}]
  %s1 = inlined_call_operand.vmem [shape: f32[2,128], index: 1, kind: input, shape index: {}, may-alias: {1,3}]
  %s2 = inlined_call_operand.vmem [shape: f32[2,128], index: 2, kind: input, shape index: {}]
  %s3 = inlined_call_operand.vmem [shape: f32[2,128], index: 3, kind: output, shape index: {}, may-alias: {1,3}]
  %s4 = sld [smem:[#allocation0]]
  $region22: #{_forward.1} parent=0
    _
  %s6 = ssub.s32 1, %s4
  %s7 = scalar_select 0, %s6, %s4
  %8 = sst [smem:[#allocation2]] %s0
  // Predicated region
  $region2: #{_forward.1} parent=0 // pred_check
    _
  $region3: #{_forward.1} parent=0 // pred_check_branch
    %10 = sbr.rel (0) target = $region5
  $region4: #{_forward.1} parent=0 // pred_region
    _
  $region5: #{_forward.1} parent=0 // pred_fallthru
    _
  // Predicated region
  $region6: #{_forward.1} parent=0 // pred_check
    _
  $region7: #{_forward.1} parent=0 // pred_check_branch
    %12 = sbr.rel (0) target = $region9
  $region8: #{_forward.1} parent=0 // pred_region
    _
  $region9: #{_forward.1} parent=0 // pred_fallthru
    _
  // Predicated region
  $region10: #{_forward.1} parent=0 // pred_check
    _
  $region11: #{_forward.1} parent=0 // pred_check_branch
    %14 = sbr.rel (0) target = $region13
  $region12: #{_forward.1} parent=0 // pred_region
    _
  $region13: #{_forward.1} parent=0 // pred_fallthru
    _
  %s15 = sld [smem:[#allocation2]]
  %v16 = vld [vmem:[%s2] sm:$0x3]
  %v17 = vstv %s15
  %v18 = vsub.f32 %v16, %v17
  %v19 = vmul.f32 %v16, 125.663704
  %v20 = vld [vmem:[%s1] sm:$0x3]
  %v21 = vmul.f32 %v18, 125.663704
  %v22 = vand.u32 2147483647, %v19
  %vm23 = vcmp.le.f32.partialorder %v22, 0.7853982
  %vm24 = vcmp.lt.s32.totalorder %v19, 0
  %v25 = vand.u32 %v19, 2139095040
  %v26 = vshrl.u32 %v25, 23
  %v27 = vsub.s32 %v26, 127
  %v28 = vand.u32 2147483647, %v19
  %v29 = vand.u32 %v28, 8388607
  %v30 = vor.u32 %v29, 8388608
  %v31 = vsub.s32 0, %v30
  %v32 = vadd.s32 %v27, 1
  %vm33 = vcmp.gt.s32.totalorder %v32, 0
  %v34 = vsel %vm33, %v32, 0
  %v35 = vshrl.u32 %v34, 5
  %v36 = vand.u32 %v34, 31
  %v37 = vsub.s32 32, %v36
  %v38 = vshrl.u32 683565275, %v37
  %v39 = vshll.u32 683565275, %v36
  %v40 = vshrl.u32 2475754826, %v37
  %v41 = vor.u32 %v39, %v40
  %v42 = vshll.u32 2475754826, %v36
  %v43 = vshrl.u32 2131351028, %v37
  %v44 = vor.u32 %v42, %v43
  %v45 = vshll.u32 2131351028, %v36
  %v46 = vshrl.u32 2102212464, %v37
  %v47 = vor.u32 %v45, %v46
  %v48 = vshll.u32 2102212464, %v36
  %v49 = vshrl.u32 920167782, %v37
  %v50 = vor.u32 %v48, %v49
  %v51 = vshll.u32 920167782, %v36
  %v52 = vshrl.u32 1326507024, %v37
  %v53 = vor.u32 %v51, %v52
  %vm54 = vcmp.lt.s32.totalorder %v35, 1
  %vm55 = vcmp.lt.s32.totalorder %v35, 2
  %vm56 = vcmp.lt.s32.totalorder %v35, 3
  %vm57 = vcmp.lt.s32.totalorder %v35, 4
  %v58 = vsel %vm54, %v38, %v41
  %v59 = vsel %vm57, %v47, 2102212464
  %v60 = vsel %vm56, %v44, %v59
  %v61 = vsel %vm55, %v58, %v60
  %v62 = vsel %vm54, %v41, %v44
  %v63 = vsel %vm57, %v50, 920167782
  %v64 = vsel %vm56, %v47, %v63
  %v65 = vsel %vm55, %v62, %v64
  %v66 = vsel %vm54, %v44, %v47
  %v67 = vsel %vm57, %v53, 1326507024
  %v68 = vsel %vm56, %v50, %v67
  %v69 = vsel %vm55, %v66, %v68
  %v70 = vshll.u32 %v30, 8
  %v71 = vmul.u32.u64.compose %v70, %v69
  %v72 = vextract.low.u32 %v71
  %v73 = vextract.high.u32 %v71
  %v74 = vmul.u32.u64.compose %v70, %v65
  %v75 = vextract.low.u32 %v74
  %v76 = vextract.high.u32 %v74
  %v77 = vmul.u32 %v70, %v61
  %v78 = vadd.s32 %v73, %v75
  %vm79 = vc.u32 %v73, %v75
  %v80 = vadd.s32 %v76, 1
  %v81 = vsel %vm79, %v80, %v76
  %v82 = vadd.s32 %v77, %v81
  %v83 = vadd.s32 %v82, 536870912
  %v84 = vshrl.u32 %v83, 30
  %v85 = vshll.u32 %v84, 30
  %v86 = vsub.s32 %v82, %v85
  %vm87 = vcmp.lt.s32.totalorder %v86, 0
  %v88 = vsub.s32 0, %v86
  %v89 = vsel %vm87, %v88, %v86
  %v90 = vclz %v89
  %v91 = vsub.s32 %v90, 2
  %vm92 = vcmp.gt.s32.totalorder 0, %v91
  %v93 = vsel %vm92, 0, %v91
  %v94 = vsub.s32 32, %v93
  %v95 = vshll.u32 %v86, %v93
  %v96 = vshrl.u32 %v78, %v94
  %v97 = vor.u32 %v95, %v96
  %v98 = vsub.s32 4294967266, %v93
  %v99 = vadd.s32 %v98, 127
  %v100 = vshll.u32 %v99, 23
  %v101 = vor.u32 4788187, %v100
  %v102 = vand.u32 2147483647, %v101
  %v104 = vcvt.s32.f32 %v97
  %v105 = vmul.f32 %v104, %v102
  %v106 = vxor.u32 %v105, 2147483648
  %v107 = vsel %vm24, %v106, %v105
  %v108 = vsub.s32 4, %v84
  %v109 = vsel %vm24, %v108, %v84
  %v110 = vsel %vm23, %v19, %v107
  %v111 = vsel %vm23, 0, %v109
  %v112 = vcosq.f32.pop %v110
  %v113 = vsinq.f32.pop %v110
  %vm114 = vweird.f32 %v19
  %v115 = vadd.s32 %v111, 3
  %v116 = vand.u32 %v115, 3
  %vm117 = vcmp.lt.s32.totalorder %v116, 2
  %vm118 = vcmp.eq.s32.totalorder %v116, 0
  %v119 = vxor.u32 %v113, 2147483648
  %v120 = vsel %vm118, %v112, %v119
  %vm121 = vcmp.eq.s32.totalorder %v116, 2
  %v122 = vxor.u32 %v112, 2147483648
  %v123 = vsel %vm121, %v122, %v113
  %v124 = vsel %vm117, %v120, %v123
  %v125 = vsel %vm114, nan, %v124
  %v126 = vmul.f32 %v21, %v125
  %v127 = vand.u32 2147483647, %v19
  %vm128 = vcmp.le.f32.partialorder %v127, 0.7853982
  %vm129 = vcmp.lt.s32.totalorder %v19, 0
  %v130 = vand.u32 %v19, 2139095040
  %v131 = vshrl.u32 %v130, 23
  %v132 = vsub.s32 %v131, 127
  %v133 = vand.u32 2147483647, %v19
  %v134 = vand.u32 %v133, 8388607
  %v135 = vor.u32 %v134, 8388608
  %v136 = vsub.s32 0, %v135
  %v137 = vadd.s32 %v132, 1
  %vm138 = vcmp.gt.s32.totalorder %v137, 0
  %v139 = vsel %vm138, %v137, 0
  %v140 = vshrl.u32 %v139, 5
  %v141 = vand.u32 %v139, 31
  %v142 = vsub.s32 32, %v141
  %v143 = vshrl.u32 683565275, %v142
  %v144 = vshll.u32 683565275, %v141
  %v145 = vshrl.u32 2475754826, %v142
  %v146 = vor.u32 %v144, %v145
  %v147 = vshll.u32 2475754826, %v141
  %v148 = vshrl.u32 2131351028, %v142
  %v149 = vor.u32 %v147, %v148
  %v150 = vshll.u32 2131351028, %v141
  %v151 = vshrl.u32 2102212464, %v142
  %v152 = vor.u32 %v150, %v151
  %v153 = vshll.u32 2102212464, %v141
  %v154 = vshrl.u32 920167782, %v142
  %v155 = vor.u32 %v153, %v154
  %v156 = vshll.u32 920167782, %v141
  %v157 = vshrl.u32 1326507024, %v142
  %v158 = vor.u32 %v156, %v157
  %vm159 = vcmp.lt.s32.totalorder %v140, 1
  %vm160 = vcmp.lt.s32.totalorder %v140, 2
  %vm161 = vcmp.lt.s32.totalorder %v140, 3
  %vm162 = vcmp.lt.s32.totalorder %v140, 4
  %v163 = vsel %vm159, %v143, %v146
  %v164 = vsel %vm162, %v152, 2102212464
  %v165 = vsel %vm161, %v149, %v164
  %v166 = vsel %vm160, %v163, %v165
  %v167 = vsel %vm159, %v146, %v149
  %v168 = vsel %vm162, %v155, 920167782
  %v169 = vsel %vm161, %v152, %v168
  %v170 = vsel %vm160, %v167, %v169
  %v171 = vsel %vm159, %v149, %v152
  %v172 = vsel %vm162, %v158, 1326507024
  %v173 = vsel %vm161, %v155, %v172
  %v174 = vsel %vm160, %v171, %v173
  %v175 = vshll.u32 %v135, 8
  %v176 = vmul.u32.u64.compose %v175, %v174
  %v177 = vextract.low.u32 %v176
  %v178 = vextract.high.u32 %v176
  %v179 = vmul.u32.u64.compose %v175, %v170
  %v180 = vextract.low.u32 %v179
  %v181 = vextract.high.u32 %v179
  %v182 = vmul.u32 %v175, %v166
  %v183 = vadd.s32 %v178, %v180
  %vm184 = vc.u32 %v178, %v180
  %v185 = vadd.s32 %v181, 1
  %v186 = vsel %vm184, %v185, %v181
  %v187 = vadd.s32 %v182, %v186
  %v188 = vadd.s32 %v187, 536870912
  %v189 = vshrl.u32 %v188, 30
  %v190 = vshll.u32 %v189, 30
  %v191 = vsub.s32 %v187, %v190
  %vm192 = vcmp.lt.s32.totalorder %v191, 0
  %v193 = vsub.s32 0, %v191
  %v194 = vsel %vm192, %v193, %v191
  %v195 = vclz %v194
  %v196 = vsub.s32 %v195, 2
  %vm197 = vcmp.gt.s32.totalorder 0, %v196
  %v198 = vsel %vm197, 0, %v196
  %v199 = vsub.s32 32, %v198
  %v200 = vshll.u32 %v191, %v198
  %v201 = vshrl.u32 %v183, %v199
  %v202 = vor.u32 %v200, %v201
  %v203 = vsub.s32 4294967266, %v198
  %v204 = vadd.s32 %v203, 127
  %v205 = vshll.u32 %v204, 23
  %v206 = vor.u32 4788187, %v205
  %v207 = vand.u32 2147483647, %v206
  %v209 = vcvt.s32.f32 %v202
  %v210 = vmul.f32 %v209, %v207
  %v211 = vxor.u32 %v210, 2147483648
  %v212 = vsel %vm129, %v211, %v210
  %v213 = vsub.s32 4, %v189
  %v214 = vsel %vm129, %v213, %v189
  %v215 = vsel %vm128, %v19, %v212
  %v216 = vsel %vm128, 0, %v214
  %v217 = vcosq.f32.pop %v215
  %v218 = vsinq.f32.pop %v215
  %vm219 = vweird.f32 %v19
  %v220 = vand.u32 %v216, 3
  %vm221 = vcmp.lt.s32.totalorder %v220, 2
  %vm222 = vcmp.eq.s32.totalorder %v220, 0
  %v223 = vxor.u32 %v218, 2147483648
  %v224 = vsel %vm222, %v217, %v223
  %vm225 = vcmp.eq.s32.totalorder %v220, 2
  %v226 = vxor.u32 %v217, 2147483648
  %v227 = vsel %vm225, %v226, %v218
  %v228 = vsel %vm221, %v224, %v227
  %v229 = vsel %vm219, nan, %v228
  %v230 = vmul.f32 %v229, 2.0
  %v231 = vsub.f32 %v126, %v230
  %v232 = vmul.f32 %v18, %v231
  %v233 = vadd.f32 %v20, %v232
  %234 = vst [vmem:[%s3] sm:$0x3] %v233
  // Predicated region
  $region14: #{_forward.1} parent=0 // pred_check
    _
  $region15: #{_forward.1} parent=0 // pred_check_branch
    %236 = sbr.rel (0) target = $region17
  $region16: #{_forward.1} parent=0 // pred_region
    _
  $region17: #{_forward.1} parent=0 // pred_fallthru
    _
  // Predicated region
  $region18: #{_forward.1} parent=0 // pred_check
    _
  $region19: #{_forward.1} parent=0 // pred_check_branch
    %238 = sbr.rel (0) target = $region21
  $region20: #{_forward.1} parent=0 // pred_region
    _
  $region21: #{_forward.1} parent=0 // pred_fallthru
    _

</llo_original>
